<compile_context>
chip_gen: v5e
topology: v5e:2x2
jax: 0.10.0
libtpu: 0.0.40
codegen_flags: <defaults>
</compile_context>

<pallas_src>
import functools

import jax
import jax.numpy as jnp
from jax.experimental import pallas as pl
from jax.experimental.pallas import tpu as pltpu


def _fill_kernel(par_ref, out_ref):
    # par_ref: (1,) float32 scalar parameter in SMEM.
    # out_ref: (num_graphs, 1) float32 VMEM block (full array == block shape,
    #          so the (8,128) divisibility rule is satisfied).
    out_ref[...] = jnp.full(out_ref.shape, par_ref[0], dtype=out_ref.dtype)


def _pallas_fill(par: jax.Array, num_graphs: int) -> jax.Array:
    # Padded VMEM footprint of a (num_graphs, 1) f32 block:
    # sublanes round up to 8, lanes round up to 128.
    padded_rows = ((num_graphs + 7) // 8) * 8
    block_bytes = padded_rows * 128 * 4

    compiler_params = None
    if block_bytes > (12 << 20):  # only for pathological num_graphs (v5e 16MiB default)
        compiler_params = pltpu.CompilerParams(
            vmem_limit_bytes=min(2 * block_bytes, 100 << 20)
        )

    return pl.pallas_call(
        _fill_kernel,
        out_shape=jax.ShapeDtypeStruct((num_graphs, 1), jnp.float32),
        in_specs=[pl.BlockSpec(memory_space=pltpu.SMEM)],   # scalar param in SMEM
        out_specs=pl.BlockSpec(memory_space=pltpu.VMEM),    # whole array, one block
        compiler_params=compiler_params,
    )(par.astype(jnp.float32))


# ---- differentiable wrapper (pallas_call has no automatic VJP) --------------
@functools.partial(jax.custom_vjp, nondiff_argnums=(1,))
def _disc_fake_fill(par: jax.Array, num_graphs: int) -> jax.Array:
    return _pallas_fill(par, num_graphs)


def _disc_fake_fill_fwd(par, num_graphs):
    return _pallas_fill(par, num_graphs), None


def _disc_fake_fill_bwd(num_graphs, _res, g):
    # out = par * ones((num_graphs, 1))  =>  d/dpar = sum(g)
    return (jnp.sum(g).astype(jnp.float32).reshape(1),)


_disc_fake_fill.defvjp(_disc_fake_fill_fwd, _disc_fake_fill_bwd)


@functools.partial(jax.jit, static_argnames=("num_graphs",))
def disc_fake_forward(par: jax.Array, *, num_graphs: int) -> jax.Array:
    """Equivalent of ModelClass.forward.

    par:        shape (1,) float32 parameter (initialized to 0.5 like the module).
    num_graphs: static Python int == gen_batch.batch[-1] + 1.
    Returns (num_graphs, 1) float32 filled with par.
    """
    return _disc_fake_fill(par, num_graphs)


if __name__ == "__main__":
    key = jax.random.PRNGKey(0)

    # Deterministic parameter, matching torch.nn.Parameter(torch.tensor([0.5])).
    par = jnp.array([0.5], dtype=jnp.float32)

    # Small synthetic PyG-like "gen_batch": 8 nodes over 2 graphs, 3 features.
    batch_host = [0, 0, 0, 0, 1, 1, 1, 1]
    num_graphs = batch_host[-1] + 1                          # static; mirrors batch[-1] + 1
    batch = jnp.array(batch_host, dtype=jnp.int32)           # not needed by the math
    x = jax.random.normal(key, (len(batch_host), 3), dtype=jnp.float32)  # unused by forward

    out = disc_fake_forward(par, num_graphs=num_graphs)
    out = jax.block_until_ready(out)

    assert out.shape == (num_graphs, 1), out.shape
    assert out.dtype == jnp.float32
    assert bool(jnp.allclose(out, 0.5)), out

    # Gradient sanity check for the trainable parameter: d/dpar sum(out) = num_graphs.
    g = jax.grad(lambda p: jnp.sum(disc_fake_forward(p, num_graphs=num_graphs)))(par)
    g = jax.block_until_ready(g)
    assert g.shape == (1,), g.shape
    assert bool(jnp.allclose(g, float(num_graphs))), g

    print("KERNEL_OK")
</pallas_src>

<mosaic_0001>
module attributes {stable_mosaic.version = 11 : i64} {
  func.func @_fill_kernel(%arg0: memref<1xf32, #tpu.memory_space<smem>>, %arg1: memref<2x1xf32, #tpu.memory_space<vmem>>) attributes {dimension_semantics = [], scalar_prefetch = 0 : i64, scratch_operands = 0 : i64, tpu.core_type = #tpu.core_type<tc>} {
    %c0 = arith.constant 0 : index
    %0 = memref.load %arg0[%c0] : memref<1xf32, #tpu.memory_space<smem>>
    %1 = vector.broadcast %0 : f32 to vector<2x1xf32>
    %c0_0 = arith.constant 0 : index
    %c0_1 = arith.constant 0 : index
    %2 = vector.load %arg1[%c0_0, %c0_1] : memref<2x1xf32, #tpu.memory_space<vmem>>, vector<2x1xf32>
    tpu.vector_store %arg1[%c0_0, %c0_1], %1 {strides = array<i32>} : memref<2x1xf32, #tpu.memory_space<vmem>>, vector<2x1xf32>,
    return
  }
}

</mosaic_0001>

<llo_original>
// kernel: disc_fake_forward.1
$region0: #{disc_fake_forward.1}
  #allocation0 [shape = 'u32[]', space=smem, size = 0x4, offset = 0x4, fixed_abs, tag = 'smem constant byte address 0x4 - core index']
  #allocation1 [shape = 'u32[72,128]{1,0:T(1,128)}', space=vmem, size = 0x9000, scoped, tag = 'internal scratch']
  #allocation2 [shape = 'f32[1]{0:T(128)S(6)}', space=smem, size = 0x200, scoped, tag = 'scoped memory for disc_fake_forward.1']
  %s0 = inlined_call_operand.<no memory space> [shape: f32[1], index: 0, kind: input, shape index: {}]
  %s1 = inlined_call_operand.vmem [shape: f32[2,1], index: 1, kind: output, shape index: {}]
  %s2 = sld [smem:[#allocation0]]
  $region14: #{disc_fake_forward.1} parent=0
    _
  %s4 = ssub.s32 1, %s2
  %s5 = scalar_select 0, %s4, %s2
  %6 = sst [smem:[#allocation2]] %s0
  // Predicated region
  $region2: #{disc_fake_forward.1} parent=0 // pred_check
    _
  $region3: #{disc_fake_forward.1} parent=0 // pred_check_branch
    %8 = sbr.rel (0) target = $region5
  $region4: #{disc_fake_forward.1} parent=0 // pred_region
    _
  $region5: #{disc_fake_forward.1} parent=0 // pred_fallthru
    _
  %s9 = sld [smem:[#allocation2]]
  %v10 = vstv %s9
  %vm11 = vcmask 1024
  %12 = vst.msk [vmem:[%s1] sm:$0x3] %vm11, %v10
  // Predicated region
  $region6: #{disc_fake_forward.1} parent=0 // pred_check
    _
  $region7: #{disc_fake_forward.1} parent=0 // pred_check_branch
    %14 = sbr.rel (0) target = $region9
  $region8: #{disc_fake_forward.1} parent=0 // pred_region
    _
  $region9: #{disc_fake_forward.1} parent=0 // pred_fallthru
    _
  // Predicated region
  $region10: #{disc_fake_forward.1} parent=0 // pred_check
    _
  $region11: #{disc_fake_forward.1} parent=0 // pred_check_branch
    %16 = sbr.rel (0) target = $region13
  $region12: #{disc_fake_forward.1} parent=0 // pred_region
    _
  $region13: #{disc_fake_forward.1} parent=0 // pred_fallthru
    _

</llo_original>
